<compile_context>
chip_gen: v5e
topology: v5e:2x2
jax: 0.10.0
libtpu: 0.0.40
codegen_flags: <defaults>
</compile_context>

<pallas_src>
import functools

import jax
import jax.numpy as jnp
from jax.experimental import pallas as pl
from jax.experimental.pallas import tpu as pltpu


# ----------------------------- k == 3 fast path ----------------------------- #

def _mean_filter3_kernel(x_ref, halo_ref, o_ref, *, scale, TH, W):
    # x_ref:    (TH, W)  rows of this H-tile (unpadded)
    # halo_ref: (2, W)   [row above tile, row below tile] (reflected at edges)
    # o_ref:    (TH, W)  output tile
    x = x_ref[...].astype(jnp.float32)
    halo = halo_ref[...].astype(jnp.float32)

    # Vertical 3x1 sum: x[i-1] + x[i] + x[i+1] with boundary rows from the halo.
    xu = jnp.concatenate([halo[0:1, :], x[:-1, :]], axis=0)   # x[i-1]
    xd = jnp.concatenate([x[1:, :], halo[1:2, :]], axis=0)    # x[i+1]
    v = xu + x + xd

    # Horizontal 1x3 sum with in-row reflect at columns 0 and W-1.
    if W % 128 == 0:
        # Lane-aligned: shifts via XLU rolls (frees vld/VALU slots), then fix
        # the two reflected boundary columns with selects.
        vl = pltpu.roll(v, shift=1, axis=1)     # v[:, j-1]; col 0 wrong
        vr = pltpu.roll(v, shift=-1, axis=1)    # v[:, j+1]; col W-1 wrong
        col = jax.lax.broadcasted_iota(jnp.int32, (TH, W), 1)
        vL = jnp.where(col == 0, vr, vl)        # col 0 -> v[:, 1]
        vR = jnp.where(col == W - 1, vl, vr)    # col W-1 -> v[:, W-2]
    else:
        # Small W (< 1 lane tile): plain concat of static slices.
        vL = jnp.concatenate([v[:, 1:2], v[:, :-1]], axis=1)
        vR = jnp.concatenate([v[:, 1:], v[:, W - 2:W - 1]], axis=1)

    o_ref[...] = ((vL + v + vR) * scale).astype(o_ref.dtype)


def _pick_row_tile(H, W, itemsize):
    """Largest H-tile (multiple of 8, divisor of H) with ~2 MiB input block."""
    target_rows = max(8, (2 * 1024 * 1024) // max(1, W * itemsize))
    target_rows = min(target_rows, 512, H)
    if H <= target_rows:
        return H
    t = (target_rows // 8) * 8
    while t >= 8:
        if H % t == 0:
            return t
        t -= 8
    # TODO(synk): no 8-aligned divisor of H <= target -> fall back to whole image.
    return H


# --------------------------- general-k fallback ------------------------------ #

def _mean_filter_general_kernel(xpad_ref, o_ref, *, k, H, W, scale):
    # xpad_ref: (H + 2p, W + 2p) reflect-padded image; o_ref: (H, W)
    acc = jnp.zeros((H, W), jnp.float32)
    for dy in range(k):
        for dx in range(k):
            acc = acc + xpad_ref[dy:dy + H, dx:dx + W].astype(jnp.float32)
    o_ref[...] = (acc * scale).astype(o_ref.dtype)


# --------------------------------- wrapper ----------------------------------- #

def mean_filter(x, kernel_size=3):
    """x: (N, 1, H, W) -> (N, 1, H, W). Matches MeanFilter.forward (uniform 1/k^2 weight)."""
    N, C, H, W = x.shape
    assert C == 1, "MeanFilter conv has in_channels=out_channels=1"
    k = kernel_size
    p = k // 2
    scale = 1.0 / float(k * k)   # module weight is fixed: ones / k^2, no bias
    NC = N * C
    x3 = x.reshape(NC, H, W)

    if k != 3:
        # TODO(synk): general-k path keeps the padded-HBM copy; only the default
        # k=3 path gets the in-kernel halo / separable optimization.
        xpad = jnp.pad(x3, ((0, 0), (p, p), (p, p)), mode="reflect")
        Hp, Wp = H + 2 * p, W + 2 * p
        out3 = pl.pallas_call(
            functools.partial(_mean_filter_general_kernel, k=k, H=H, W=W, scale=scale),
            out_shape=jax.ShapeDtypeStruct((NC, H, W), x.dtype),
            grid=(NC,),
            in_specs=[pl.BlockSpec((pl.Squeezed(), Hp, Wp), lambda n: (n, 0, 0))],
            out_specs=pl.BlockSpec((pl.Squeezed(), H, W), lambda n: (n, 0, 0)),
            compiler_params=pltpu.CompilerParams(dimension_semantics=("parallel",)),
        )(xpad)
        return out3.reshape(N, C, H, W)

    # ---- k == 3: tiled, pad-free path ----
    TH = _pick_row_tile(H, W, x.dtype.itemsize)
    n_ht = H // TH

    # Per-tile vertical halo rows (row above / below each tile), reflected at the
    # image edges (reflect: row -1 -> 1, row H -> H-2). Tiny gather: 2 rows/tile.
    starts = [j * TH for j in range(n_ht)]
    up_idx = jnp.array([1 if s == 0 else s - 1 for s in starts], jnp.int32)
    dn_idx = jnp.array([H - 2 if s + TH >= H else s + TH for s in starts], jnp.int32)
    halo = jnp.stack([x3[:, up_idx, :], x3[:, dn_idx, :]], axis=2)  # (NC, n_ht, 2, W)

    kernel = functools.partial(_mean_filter3_kernel, scale=scale, TH=TH, W=W)
    out3 = pl.pallas_call(
        kernel,
        out_shape=jax.ShapeDtypeStruct((NC, H, W), x.dtype),
        grid=(NC, n_ht),
        in_specs=[
            pl.BlockSpec((pl.Squeezed(), TH, W), lambda n, j: (n, j, 0)),
            pl.BlockSpec((pl.Squeezed(), pl.Squeezed(), 2, W), lambda n, j: (n, j, 0, 0)),
        ],
        out_specs=pl.BlockSpec((pl.Squeezed(), TH, W), lambda n, j: (n, j, 0)),
        compiler_params=pltpu.CompilerParams(
            dimension_semantics=("parallel", "parallel"),
            vmem_limit_bytes=32 * 1024 * 1024,
        ),
    )(x3, halo)
    return out3.reshape(N, C, H, W)


# -------------------------------- reference ---------------------------------- #

def _reference(x, kernel_size=3):
    k = kernel_size
    p = k // 2
    w = jnp.ones((1, 1, k, k), jnp.float32) / (k * k)
    xpad = jnp.pad(x, ((0, 0), (0, 0), (p, p), (p, p)), mode="reflect")
    return jax.lax.conv_general_dilated(
        xpad.astype(jnp.float32), w,
        window_strides=(1, 1), padding="VALID",
        dimension_numbers=("NCHW", "OIHW", "NCHW"),
    ).astype(x.dtype)


if __name__ == "__main__":
    kernel_size = 3
    key = jax.random.PRNGKey(0)
    x = jax.random.normal(key, (2, 1, 16, 16), dtype=jnp.float32)

    out = mean_filter(x, kernel_size=kernel_size)
    out = jax.block_until_ready(out)

    ref = _reference(x, kernel_size=kernel_size)
    assert out.shape == x.shape
    assert jnp.allclose(out, ref, atol=1e-5, rtol=1e-5)
    print("KERNEL_OK")
</pallas_src>

<mosaic_0001>
module attributes {stable_mosaic.version = 11 : i64} {
  func.func @_mean_filter3_kernel(%arg0: i32, %arg1: i32, %arg2: memref<1x16x16xf32, #tpu.memory_space<vmem>>, %arg3: memref<1x1x2x16xf32, #tpu.memory_space<vmem>>, %arg4: memref<1x16x16xf32, #tpu.memory_space<vmem>>) attributes {dimension_semantics = [#tpu.dimension_semantics<parallel>, #tpu.dimension_semantics<parallel>], iteration_bounds = array<i64: 2, 1>, scalar_prefetch = 0 : i64, scratch_operands = 0 : i64, tpu.core_type = #tpu.core_type<tc>, window_params = [{transform_indices = @transform_0, window_bounds = array<i64: 1, 16, 16>}, {transform_indices = @transform_1, window_bounds = array<i64: 1, 1, 2, 16>}, {transform_indices = @transform_2, window_bounds = array<i64: 1, 16, 16>}]} {
    %c0 = arith.constant 0 : index
    %c0_0 = arith.constant 0 : index
    %c0_1 = arith.constant 0 : index
    %0 = vector.load %arg2[%c0, %c0_0, %c0_1] : memref<1x16x16xf32, #tpu.memory_space<vmem>>, vector<1x16x16xf32>
    %1 = vector.shape_cast %0 : vector<1x16x16xf32> to vector<16x16xf32>
    %c0_2 = arith.constant 0 : index
    %c0_3 = arith.constant 0 : index
    %c0_4 = arith.constant 0 : index
    %c0_5 = arith.constant 0 : index
    %2 = vector.load %arg3[%c0_2, %c0_3, %c0_4, %c0_5] : memref<1x1x2x16xf32, #tpu.memory_space<vmem>>, vector<1x1x2x16xf32>
    %3 = vector.shape_cast %2 : vector<1x1x2x16xf32> to vector<2x16xf32>
    %4 = vector.extract_strided_slice %3 {offsets = [0, 0], sizes = [1, 16], strides = [1, 1]} : vector<2x16xf32> to vector<1x16xf32>
    %5 = vector.extract_strided_slice %1 {offsets = [0, 0], sizes = [15, 16], strides = [1, 1]} : vector<16x16xf32> to vector<15x16xf32>
    %6 = tpu.concatenate %4, %5 in 0 : vector<1x16xf32>, vector<15x16xf32> -> vector<16x16xf32>
    %7 = vector.extract_strided_slice %1 {offsets = [1, 0], sizes = [15, 16], strides = [1, 1]} : vector<16x16xf32> to vector<15x16xf32>
    %8 = vector.extract_strided_slice %3 {offsets = [1, 0], sizes = [1, 16], strides = [1, 1]} : vector<2x16xf32> to vector<1x16xf32>
    %9 = tpu.concatenate %7, %8 in 0 : vector<15x16xf32>, vector<1x16xf32> -> vector<16x16xf32>
    %10 = arith.addf %6, %1 : vector<16x16xf32>
    %11 = arith.addf %10, %9 : vector<16x16xf32>
    %12 = vector.extract_strided_slice %11 {offsets = [0, 1], sizes = [16, 1], strides = [1, 1]} : vector<16x16xf32> to vector<16x1xf32>
    %13 = vector.extract_strided_slice %11 {offsets = [0, 0], sizes = [16, 15], strides = [1, 1]} : vector<16x16xf32> to vector<16x15xf32>
    %14 = tpu.concatenate %12, %13 in 1 : vector<16x1xf32>, vector<16x15xf32> -> vector<16x16xf32>
    %15 = vector.extract_strided_slice %11 {offsets = [0, 1], sizes = [16, 15], strides = [1, 1]} : vector<16x16xf32> to vector<16x15xf32>
    %16 = vector.extract_strided_slice %11 {offsets = [0, 14], sizes = [16, 1], strides = [1, 1]} : vector<16x16xf32> to vector<16x1xf32>
    %17 = tpu.concatenate %15, %16 in 1 : vector<16x15xf32>, vector<16x1xf32> -> vector<16x16xf32>
    %18 = arith.addf %14, %11 : vector<16x16xf32>
    %19 = arith.addf %18, %17 : vector<16x16xf32>
    %cst = arith.constant 0.111111112 : f32
    %20 = vector.broadcast %cst : f32 to vector<16x16xf32>
    %21 = arith.mulf %19, %20 : vector<16x16xf32>
    %c0_6 = arith.constant 0 : index
    %c0_7 = arith.constant 0 : index
    %c0_8 = arith.constant 0 : index
    %22 = vector.load %arg4[%c0_6, %c0_7, %c0_8] : memref<1x16x16xf32, #tpu.memory_space<vmem>>, vector<1x16x16xf32>
    %23 = vector.shape_cast %22 : vector<1x16x16xf32> to vector<16x16xf32>
    %24 = vector.shape_cast %21 : vector<16x16xf32> to vector<1x16x16xf32>
    tpu.vector_store %arg4[%c0_6, %c0_7, %c0_8], %24 {strides = array<i32>} : memref<1x16x16xf32, #tpu.memory_space<vmem>>, vector<1x16x16xf32>,
    return
  }
  func.func @transform_0(%arg0: i32, %arg1: i32) -> (i32, i32, i32) {
    %c0_i32 = arith.constant 0 : i32
    %c0_i32_0 = arith.constant 0 : i32
    return %arg0, %arg1, %c0_i32 : i32, i32, i32
  }
  func.func @transform_1(%arg0: i32, %arg1: i32) -> (i32, i32, i32, i32) {
    %c0_i32 = arith.constant 0 : i32
    %c0_i32_0 = arith.constant 0 : i32
    %c0_i32_1 = arith.constant 0 : i32
    return %arg0, %arg1, %c0_i32, %c0_i32_0 : i32, i32, i32, i32
  }
  func.func @transform_2(%arg0: i32, %arg1: i32) -> (i32, i32, i32) {
    %c0_i32 = arith.constant 0 : i32
    %c0_i32_0 = arith.constant 0 : i32
    return %arg0, %arg1, %c0_i32 : i32, i32, i32
  }
}

</mosaic_0001>

<llo_original>
// kernel: tpu_custom_call.1
$region0: #{tpu_custom_call.1}
  #allocation0 [shape = 'u32[]', space=smem, size = 0x4, offset = 0x4, fixed_abs, tag = 'smem constant byte address 0x4 - core index']
  #allocation1 [shape = 'u32[72,128]{1,0:T(1,128)}', space=vmem, size = 0x9000, scoped, tag = 'internal scratch']
  %s0 = inlined_call_operand.hbm [shape: f32[2,16,16], index: 0, kind: input, shape index: {}]
  %s1 = inlined_call_operand.hbm [shape: f32[2,1,2,16], index: 1, kind: input, shape index: {}]
  %s2 = inlined_call_operand.hbm [shape: f32[2,16,16], index: 2, kind: output, shape index: {}]
  %s3 = sld [smem:[#allocation0]]
  $region49: #{tpu_custom_call.1} parent=0
    _
  %s5 = ssub.s32 1, %s3
  %s6 = scalar_select 0, %s5, %s3
  $region1: #{tpu_custom_call.1} parent=0
    #allocation2 [shape = 'u8[16384]{0}', space=vmem, size = 0x4000, scoped, tag = 'input window, operand 0']
    #allocation3 [shape = 's32[2]{0}', space=sflag, size = 0x8, scoped, tag = 'scoped memory for tpu_custom_call.1']
    #allocation4 [shape = 's32[2]{0}', space=sflag, size = 0x8, scoped, tag = 'scoped memory for tpu_custom_call.1']
    #allocation5 [shape = 'u8[2048]{0}', space=vmem, size = 0x800, scoped, tag = 'input window, operand 1']
    #allocation6 [shape = 's32[2]{0}', space=sflag, size = 0x8, scoped, tag = 'scoped memory for tpu_custom_call.1']
    #allocation7 [shape = 'u8[16384]{0}', space=vmem, size = 0x4000, scoped, tag = 'output window, operand 0']
    %7 = vsyncpa [#allocation3], 0
    %s8 = scalar_lea.sflag [#allocation3], 1
    %9 = vsyncpa %s8, 0
    %10 = vsyncpa [#allocation6], 0
    %s11 = scalar_lea.sflag [#allocation6], 1
    %12 = vsyncpa %s11, 0
    %13 = vsyncpa [#allocation4], 0
    %s14 = scalar_lea.sflag [#allocation4], 1
    %15 = vsyncpa %s14, 0
    loop: start=0, step=1, limit=4
    $region2: #{tpu_custom_call.1} parent=1 // loop_pre_header
      _
    $region3: #{tpu_custom_call.1} parent=1 // loop_header
      %s17 = sphi 0, %s21
      %p18 = scmp.ge.s32.totalorder %s17, 4
      %s24 = sphi 0, %s36
      %s25 = sphi 0, %s32
      %s26 = sphi 0, %s24
      %s27 = sphi 0, %s25
      %s28 = sphi 0, %s26
      %s29 = sphi 0, %s27
      %s41 = sphi 0, %s43
      %s44 = sphi 0, %s41
      %s45 = sphi 0, %s44
      %s61 = sphi 0, %s45
      %s69 = sphi 0, %s71
      %s72 = sphi 0, %s69
      %s73 = sphi 0, %s72
      %s89 = sphi 0, %s73
      %s97 = sphi 0, %s99
      %s100 = sphi 0, %s97
      %s101 = sphi 0, %s100
      %s117 = sphi 0, %s101
    $region4: #{tpu_custom_call.1} parent=1 // loop_header_branch
      %20 = sbr.rel (%p18) target = $region8
    $region5: #{tpu_custom_call.1} parent=1 // loop_body
      %s22 = ssub.s32 %s17, 1
      %s23 = ssub.s32 %s17, 2
      %s30 = sadd.s32 1, %s25
      %p31 = scmp.ge.s32.totalorder %s30, 1
      %s32 = scalar_select %p31, 0, %s30
      %s33 = sadd.s32 1, %s24
      %s34 = scalar_select %p31, %s33, %s24
      %p35 = scmp.ge.s32.totalorder %s34, 2
      %s36 = scalar_select %p35, 0, %s34
      %s37 = ssub.s32 %s24, %s36
      %s38 = ssub.s32 %s25, %s32
      %s39 = sor.u32 %s37, %s38
      %p40 = scmp.eq.s32.totalorder %s39, 0
      %s42 = sadd.s32 %s41, 1
      %s43 = scalar_select %p40, %s41, %s42
      %p46 = pneg %p40
      %p47 = scmp.eq.s32.totalorder %s17, 1
      %p48 = por %p46, %p47
      %p49 = scmp.ne.s32.totalorder %s41, %s44
      %p50 = scmp.eq.s32.totalorder %s17, 0
      %p51 = por %p49, %p50
      %p52 = scmp.ne.s32.totalorder %s41, %s44
      %p53 = scmp.eq.s32.totalorder %s22, 1
      %p54 = por %p52, %p53
      %p55 = scmp.ne.s32.totalorder %s44, %s45
      %p56 = scmp.eq.s32.totalorder %s22, 0
      %p57 = por %p55, %p56
      %p58 = scmp.ne.s32.totalorder %s44, %s45
      %p59 = scmp.eq.s32.totalorder %s23, 1
      %p60 = por %p58, %p59
      %p62 = scmp.ne.s32.totalorder %s45, %s61
      %p63 = scmp.eq.s32.totalorder %s23, 0
      %p64 = por %p62, %p63
      %s65 = ssub.s32 %s24, %s36
      %s66 = ssub.s32 %s25, %s32
      %s67 = sor.u32 %s65, %s66
      %p68 = scmp.eq.s32.totalorder %s67, 0
      %s70 = sadd.s32 %s69, 1
      %s71 = scalar_select %p68, %s69, %s70
      %p74 = pneg %p68
      %p75 = scmp.eq.s32.totalorder %s17, 1
      %p76 = por %p74, %p75
      %p77 = scmp.ne.s32.totalorder %s69, %s72
      %p78 = scmp.eq.s32.totalorder %s17, 0
      %p79 = por %p77, %p78
      %p80 = scmp.ne.s32.totalorder %s69, %s72
      %p81 = scmp.eq.s32.totalorder %s22, 1
      %p82 = por %p80, %p81
      %p83 = scmp.ne.s32.totalorder %s72, %s73
      %p84 = scmp.eq.s32.totalorder %s22, 0
      %p85 = por %p83, %p84
      %p86 = scmp.ne.s32.totalorder %s72, %s73
      %p87 = scmp.eq.s32.totalorder %s23, 1
      %p88 = por %p86, %p87
      %p90 = scmp.ne.s32.totalorder %s73, %s89
      %p91 = scmp.eq.s32.totalorder %s23, 0
      %p92 = por %p90, %p91
      %s93 = ssub.s32 %s24, %s36
      %s94 = ssub.s32 %s25, %s32
      %s95 = sor.u32 %s93, %s94
      %p96 = scmp.eq.s32.totalorder %s95, 0
      %s98 = sadd.s32 %s97, 1
      %s99 = scalar_select %p96, %s97, %s98
      %p102 = pneg %p96
      %p103 = scmp.eq.s32.totalorder %s17, 1
      %p104 = por %p102, %p103
      %p105 = scmp.ne.s32.totalorder %s97, %s100
      %p106 = scmp.eq.s32.totalorder %s17, 0
      %p107 = por %p105, %p106
      %p108 = scmp.ne.s32.totalorder %s97, %s100
      %p109 = scmp.eq.s32.totalorder %s22, 1
      %p110 = por %p108, %p109
      %p111 = scmp.ne.s32.totalorder %s100, %s101
      %p112 = scmp.eq.s32.totalorder %s22, 0
      %p113 = por %p111, %p112
      %p114 = scmp.ne.s32.totalorder %s100, %s101
      %p115 = scmp.eq.s32.totalorder %s23, 1
      %p116 = por %p114, %p115
      %p118 = scmp.ne.s32.totalorder %s101, %s117
      %p119 = scmp.eq.s32.totalorder %s23, 0
      %p120 = por %p118, %p119
      %p121 = scmp.le.s32.totalorder 1, %s17
      %p122 = scmp.lt.s32.totalorder %s17, 3
      %p123 = pnand %p121, %p122
      %p124 = pneg %p123
      // Predicated region
      $region9: #{tpu_custom_call.1} parent=5 // pred_check
        _
      $region10: #{tpu_custom_call.1} parent=5 // pred_check_branch
        %126 = sbr.rel (%p123) target = $region12
      $region11: #{tpu_custom_call.1} parent=5 // pred_region
        %s127 = ssub.s32 %s17, 1
      $region12: #{tpu_custom_call.1} parent=5 // pred_fallthru
        _
      %p128 = scmp.lt.s32.totalorder %s17, 2
      // Predicated region
      $region13: #{tpu_custom_call.1} parent=5 // pred_check
        %p129 = pneg %p128
      $region14: #{tpu_custom_call.1} parent=5 // pred_check_branch
        %131 = sbr.rel (%p129) target = $region16
      $region15: #{tpu_custom_call.1} parent=5 // pred_region
        // Predicated region
        $region17: #{tpu_custom_call.1} parent=15 // pred_check
          %p132 = pneg %p51
        $region18: #{tpu_custom_call.1} parent=15 // pred_check_branch
          %134 = sbr.rel (%p132) target = $region20
        $region19: #{tpu_custom_call.1} parent=15 // pred_region
          %s135 = sand.u32 %s41, 1
          %s136 = scalar_lea.sflag [#allocation3], %s135
          %s137 = sand.u32 %s41, 1
          %s138 = smul.addr %s137, 16
          %s139 = scalar_lea.vmem [#allocation2], %s138
          %s140 = smul.u32 2, %s25
          %142 = vsyncadd %s136, 0
          %s143 = smul.addr %s24, 2
          %s144 = sadd.s32 %s140, %s143
          %s145 = smul.addr %s144, 8
          %s146 = scalar_lea.hbm %s0, %s145
          %s147 = sshll.u32 %s146, 4
          %s148 = int_to_ptr.hbm [resolvable:$true] %s147
          %s149 = sshll.u32 %s139, 4
          %s150 = int_to_ptr.vmem [resolvable:$true] %s149
          %155 = dma.hbm_to_vmem [thread:$0]  %s148, 256, %s150, %s136, 128, 128, 8
        $region20: #{tpu_custom_call.1} parent=15 // pred_fallthru
          _
        // Predicated region
        $region21: #{tpu_custom_call.1} parent=15 // pred_check
          %p156 = pneg %p79
        $region22: #{tpu_custom_call.1} parent=15 // pred_check_branch
          %158 = sbr.rel (%p156) target = $region24
        $region23: #{tpu_custom_call.1} parent=15 // pred_region
          %s159 = sand.u32 %s69, 1
          %s160 = scalar_lea.sflag [#allocation6], %s159
          %s161 = sand.u32 %s69, 1
          %s162 = smul.addr %s161, 2
          %s163 = scalar_lea.vmem [#allocation5], %s162
          %165 = vsyncadd %s160, 0
          %s166 = sadd.s32 %s25, %s24
          %s167 = smul.addr %s166, 2
          %s168 = scalar_lea.hbm %s1, %s167
          %s170 = sshll.u32 %s168, 4
          %s171 = int_to_ptr.hbm [resolvable:$true] %s170
          %s172 = sshll.u32 %s163, 4
          %s173 = int_to_ptr.vmem [resolvable:$true] %s172
          %175 = dma.hbm_to_vmem [thread:$0]  %s171, 32, %s173, %s160
        $region24: #{tpu_custom_call.1} parent=15 // pred_fallthru
          _
      $region16: #{tpu_custom_call.1} parent=5 // pred_fallthru
        _
      %p176 = scmp.le.s32.totalorder 1, %s17
      %p177 = scmp.lt.s32.totalorder %s17, 3
      %p178 = pnand %p176, %p177
      %p179 = pneg %p178
      // Predicated region
      $region25: #{tpu_custom_call.1} parent=5 // pred_check
        _
      $region26: #{tpu_custom_call.1} parent=5 // pred_check_branch
        %181 = sbr.rel (%p178) target = $region28
      $region27: #{tpu_custom_call.1} parent=5 // pred_region
        %s182 = ssub.s32 %s17, 1
        %s183 = sand.u32 %s44, 1
        %s184 = scalar_lea.sflag [#allocation3], %s183
        %s185 = sand.u32 %s44, 1
        %s186 = smul.addr %s185, 16
        %s187 = scalar_lea.vmem [#allocation2], %s186
        // Predicated region
        $region29: #{tpu_custom_call.1} parent=27 // pred_check
          %p188 = pneg %p57
        $region30: #{tpu_custom_call.1} parent=27 // pred_check_branch
          %190 = sbr.rel (%p188) target = $region32
        $region31: #{tpu_custom_call.1} parent=27 // pred_region
          %192 = dma.done %s184, 256
        $region32: #{tpu_custom_call.1} parent=27 // pred_fallthru
          _
        %s193 = sand.u32 %s72, 1
        %s194 = scalar_lea.sflag [#allocation6], %s193
        %s195 = sand.u32 %s72, 1
        %s196 = smul.addr %s195, 2
        %s197 = scalar_lea.vmem [#allocation5], %s196
        // Predicated region
        $region33: #{tpu_custom_call.1} parent=27 // pred_check
          %p198 = pneg %p85
        $region34: #{tpu_custom_call.1} parent=27 // pred_check_branch
          %200 = sbr.rel (%p198) target = $region36
        $region35: #{tpu_custom_call.1} parent=27 // pred_region
          %202 = dma.done %s194, 32
        $region36: #{tpu_custom_call.1} parent=27 // pred_fallthru
          _
        %s203 = sand.u32 %s44, 1
        %s204 = scalar_lea.sflag [#allocation3], %s203
        %s205 = sand.u32 %s44, 1
        %s206 = smul.addr %s205, 16
        %s207 = scalar_lea.vmem [#allocation2], %s206
        %p208 = pneg %p57
        %p209 = pneg %p54
        %s210 = sand.u32 %s72, 1
        %s211 = scalar_lea.sflag [#allocation6], %s210
        %s212 = sand.u32 %s72, 1
        %s213 = smul.addr %s212, 2
        %s214 = scalar_lea.vmem [#allocation5], %s213
        %p215 = pneg %p85
        %p216 = pneg %p82
        %p217 = pneg %p113
        %p218 = pneg %p110
        %s219 = sand.u32 %s100, 1
        %s220 = scalar_lea.sflag [#allocation4], %s219
        %s221 = sand.u32 %s100, 1
        %s222 = smul.addr %s221, 16
        %s223 = scalar_lea.vmem [#allocation7], %s222
        %s224 = smul.u32 2, %s27
        %s225 = smul.u32 2, %s27
        %v226 = vld [vmem:[%s187] sm:$0xff]
        %v227 = vld [vmem:[%s187 + $0x8] sm:$0xff]
        %v228 = vld [vmem:[%s197] sm:$0x3]
        %vm231 = vcmask 1040384
        %v232 = vrot.slane %v226, 7
        %v233 = vrot.slane %v227, 7
        %v234 = vsel %vm231, %v232, %v233
        %v237 = vsel %vm231, %v228, %v232
        %vm238 = vcmask 1046528
        %v239 = vrot.slane %v226, 1
        %v240 = vrot.slane %v227, 1
        %v241 = vsel %vm238, %v239, %v240
        %v245 = vrot.slane %v228, 2
        %v247 = vsel %vm238, %v240, %v245
        %v248 = vadd.f32 %v237, %v226
        %v249 = vadd.f32 %v234, %v227
        %v250 = vadd.f32 %v248, %v241
        %v251 = vadd.f32 %v249, %v247
        %254 = vrot.lane.b32.xlu0 %v250, 127
        %v255 = vpop.permute.xlu0 %254
        %256 = vrot.lane.b32.xlu0 %v251, 127
        %v257 = vpop.permute.xlu0 %256
        %260 = vrot.lane.b32.xlu0 %v250, 1
        %v261 = vpop.permute.xlu0 %260
        %262 = vrot.lane.b32.xlu0 %v251, 1
        %v263 = vpop.permute.xlu0 %262
        %vm266 = vcmask 7168
        %v267 = vsel %vm266, %v255, %v261
        %v268 = vsel %vm266, %v257, %v263
        %vm269 = vcmask 121856
        %v270 = vsel %vm269, %v255, %v261
        %v271 = vsel %vm269, %v257, %v263
        %v272 = vadd.f32 %v267, %v250
        %v273 = vadd.f32 %v268, %v251
        %v274 = vadd.f32 %v272, %v270
        %v275 = vadd.f32 %v273, %v271
        %v276 = vmul.f32 %v274, 0.11111111
        %v277 = vmul.f32 %v275, 0.11111111
        %vm278 = vcmask 130048
        %279 = vst.msk [vmem:[%s223] sm:$0xff] %vm278, %v276
        %280 = vst.msk [vmem:[%s223 + $0x8] sm:$0xff] %vm278, %v277
        %s281 = sand.u32 %s100, 1
        %s282 = scalar_lea.sflag [#allocation4], %s281
        %s283 = sand.u32 %s100, 1
        %s284 = smul.addr %s283, 16
        %s285 = scalar_lea.vmem [#allocation7], %s284
        // Predicated region
        $region37: #{tpu_custom_call.1} parent=27 // pred_check
          %p286 = pneg %p110
        $region38: #{tpu_custom_call.1} parent=27 // pred_check_branch
          %288 = sbr.rel (%p286) target = $region40
        $region39: #{tpu_custom_call.1} parent=27 // pred_region
          %s289 = smul.u32 2, %s27
          %291 = vsyncadd %s282, 0
          %s292 = smul.addr %s26, 2
          %s293 = sadd.s32 %s289, %s292
          %s294 = smul.addr %s293, 8
          %s295 = scalar_lea.hbm %s2, %s294
          %s296 = sshll.u32 %s285, 4
          %s297 = int_to_ptr.vmem [resolvable:$true] %s296
          %s298 = sshll.u32 %s295, 4
          %s299 = int_to_ptr.hbm [resolvable:$true] %s298
          %304 = dma.vmem_to_hbm [thread:$0]  %s297, 256, %s299, %s282, 128, 128, 8
        $region40: #{tpu_custom_call.1} parent=27 // pred_fallthru
          _
      $region28: #{tpu_custom_call.1} parent=5 // pred_fallthru
        _
      %p305 = scmp.le.s32.totalorder 2, %s17
      // Predicated region
      $region41: #{tpu_custom_call.1} parent=5 // pred_check
        %p306 = pneg %p305
      $region42: #{tpu_custom_call.1} parent=5 // pred_check_branch
        %308 = sbr.rel (%p306) target = $region44
      $region43: #{tpu_custom_call.1} parent=5 // pred_region
        %s309 = ssub.s32 %s17, 2
        // Predicated region
        $region45: #{tpu_custom_call.1} parent=43 // pred_check
          %p310 = pneg %p116
        $region46: #{tpu_custom_call.1} parent=43 // pred_check_branch
          %312 = sbr.rel (%p310) target = $region48
        $region47: #{tpu_custom_call.1} parent=43 // pred_region
          %s313 = sand.u32 %s101, 1
          %s314 = scalar_lea.sflag [#allocation4], %s313
          %s315 = sand.u32 %s101, 1
          %s316 = smul.addr %s315, 16
          %s317 = scalar_lea.vmem [#allocation7], %s316
          %319 = dma.done %s314, 256
        $region48: #{tpu_custom_call.1} parent=43 // pred_fallthru
          _
      $region44: #{tpu_custom_call.1} parent=5 // pred_fallthru
        _
    $region6: #{tpu_custom_call.1} parent=1 // loop_footer
      %s21 = sadd.s32 1, %s17
    $region7: #{tpu_custom_call.1} parent=1 // loop_footer_branch
      %16 = sbr.rel target = $region3
    $region8: #{tpu_custom_call.1} parent=1 // loop_exit
      _
    %320 = vsyncpa [#allocation3], 1
    %s321 = scalar_lea.sflag [#allocation3], 1
    %322 = vsyncpa %s321, 1
    %323 = vsyncpa [#allocation6], 1
    %s324 = scalar_lea.sflag [#allocation6], 1
    %325 = vsyncpa %s324, 1
    %326 = vsyncpa [#allocation4], 1
    %s327 = scalar_lea.sflag [#allocation4], 1
    %328 = vsyncpa %s327, 1

</llo_original>
